<compile_context>
chip_gen: v5e
topology: v5e:2x2
jax: 0.10.0
libtpu: 0.0.40
codegen_flags: <defaults>
</compile_context>

<pallas_src>
import jax
import jax.numpy as jnp
from jax import lax
from jax.experimental import pallas as pl
from jax.experimental.pallas import tpu as pltpu

EPS = 1e-5
_VMEM_LIMIT_BYTES = 64 * 1024 * 1024  # above 16/32 MiB scoped defaults, <= physical


# ----------------------------------------------------------------------------
# Kernels
# ----------------------------------------------------------------------------
def _fused_conv_in_relu_kernel(w_ref, p_ref, o_ref):
    # w_ref: (Cout, CKK) bf16, p_ref: (1, CKK, HW) bf16, o_ref: (1, Cout, HW) f32
    y = jnp.dot(w_ref[...], p_ref[0], preferred_element_type=jnp.float32)  # (Cout, HW)
    inv_hw = 1.0 / y.shape[-1]
    mean = jnp.sum(y, axis=-1, keepdims=True) * inv_hw                     # (Cout, 1)
    var = jnp.maximum(jnp.sum(y * y, axis=-1, keepdims=True) * inv_hw - mean * mean, 0.0)
    inv = lax.rsqrt(var + EPS)
    o_ref[0] = jnp.maximum((y - mean) * inv, 0.0).astype(o_ref.dtype)


def _conv_stats_kernel(w_ref, p_ref, y_ref, s1_ref, s2_ref):
    # Pass 1 of the tiled path: conv tile + per-channel sum / sum-of-squares
    # accumulated across the HW-tile grid axis (accumulator outputs stay
    # resident because their index_map is constant over t).
    t = pl.program_id(1)

    @pl.when(t == 0)
    def _():
        s1_ref[...] = jnp.zeros_like(s1_ref)
        s2_ref[...] = jnp.zeros_like(s2_ref)

    y = jnp.dot(w_ref[...], p_ref[0], preferred_element_type=jnp.float32)  # (Cout, THW)
    y_ref[0] = y
    s1_ref[0] += jnp.sum(y, axis=-1, keepdims=True)      # (Cout, 1)
    s2_ref[0] += jnp.sum(y * y, axis=-1, keepdims=True)  # (Cout, 1)


def _norm_relu_kernel(y_ref, scale_ref, shift_ref, o_ref):
    # Pass 2 of the tiled path: y * scale + shift, then ReLU (lane-dense tiles).
    y = y_ref[0]                                          # (Cout, THW) f32
    o_ref[0] = jnp.maximum(y * scale_ref[0] + shift_ref[0], 0.0).astype(o_ref.dtype)


# ----------------------------------------------------------------------------
# Host-side glue
# ----------------------------------------------------------------------------
def _im2col_lane_dense(x_nchw, kernel_size, stride, padding, dilation):
    """Zero-pad + unfold NCHW input into (N, Cin*K*K, Hout*Wout) patches.

    HW is the LAST axis so the kernel output (Cout, HW) is lane-dense.
    """
    N, Cin, H, W = x_nchw.shape
    K = kernel_size
    xp = jnp.pad(x_nchw, ((0, 0), (0, 0), (padding, padding), (padding, padding)))
    Hp, Wp = H + 2 * padding, W + 2 * padding
    Hout = (Hp - dilation * (K - 1) - 1) // stride + 1
    Wout = (Wp - dilation * (K - 1) - 1) // stride + 1
    cols = []
    for ki in range(K):
        for kj in range(K):
            i0 = ki * dilation
            j0 = kj * dilation
            cols.append(
                xp[:, :,
                   i0:i0 + stride * Hout:stride,
                   j0:j0 + stride * Wout:stride]
            )  # (N, Cin, Hout, Wout)
    # order: Cin outer, (ki*K + kj) inner -> matches weight.reshape(Cout, Cin*K*K)
    patches = jnp.stack(cols, axis=2)                     # (N, Cin, K*K, Hout, Wout)
    patches = patches.reshape(N, Cin * K * K, Hout * Wout)
    return patches, Hout, Wout


def _pick_tile_hw(HW, max_tile_hw):
    """Largest multiple-of-128 divisor of HW that is <= max_tile_hw (lane-dense),
    or HW itself (full extent / fused path) when HW is small or awkward."""
    if HW <= max_tile_hw or HW < 128:
        return HW
    t = (min(max_tile_hw, HW) // 128) * 128
    while t >= 128:
        if HW % t == 0:
            return t
        t -= 128
    return HW  # no multiple-of-128 divisor: fall back to whole-sample block


def conv_block_forward(x_nchw, weight, bias=None, *, stride=1, dilation=1, padding=0,
                       compute_dtype=jnp.bfloat16, max_tile_hw=2048):
    """conv_block with norm='in', activation='relu', pad_type='zero', groups=1.

    max_tile_hw controls the HW tile (rows of the CKK x HW matmul). Default 2048
    is a safe cross-generation choice (v7x: 64 MiB VMEM); v6e/v5e can go larger.
    """
    N, Cin, H, W = x_nchw.shape
    Cout, Cin_w, K, K2 = weight.shape
    assert Cin_w == Cin and K == K2
    # Conv bias cancels exactly under InstanceNorm2d(affine=False): drop it.
    del bias

    patches, Hout, Wout = _im2col_lane_dense(
        x_nchw.astype(compute_dtype), K, stride, padding, dilation)
    HW = Hout * Wout
    CKK = Cin * K * K
    w_mat = weight.reshape(Cout, CKK).astype(compute_dtype)   # (Cout, CKK)

    tile_hw = _pick_tile_hw(HW, max_tile_hw)

    if tile_hw == HW:
        # Fused path: whole sample fits a single lane-dense block.
        out = pl.pallas_call(
            _fused_conv_in_relu_kernel,
            out_shape=jax.ShapeDtypeStruct((N, Cout, HW), jnp.float32),
            grid_spec=pltpu.PrefetchScalarGridSpec(
                num_scalar_prefetch=0,
                grid=(N,),
                in_specs=[
                    pl.BlockSpec((Cout, CKK), lambda n: (0, 0)),      # resident weight
                    pl.BlockSpec((1, CKK, HW), lambda n: (n, 0, 0)),
                ],
                out_specs=pl.BlockSpec((1, Cout, HW), lambda n: (n, 0, 0)),
            ),
            compiler_params=pltpu.CompilerParams(
                dimension_semantics=("parallel",),
                vmem_limit_bytes=_VMEM_LIMIT_BYTES),
        )(w_mat, patches)
    else:
        # Tiled two-pass path for large feature maps.
        num_tiles = HW // tile_hw

        y, s1, s2 = pl.pallas_call(
            _conv_stats_kernel,
            out_shape=(
                jax.ShapeDtypeStruct((N, Cout, HW), jnp.float32),   # pre-norm conv
                jax.ShapeDtypeStruct((N, Cout, 1), jnp.float32),    # sum
                jax.ShapeDtypeStruct((N, Cout, 1), jnp.float32),    # sum of squares
            ),
            grid_spec=pltpu.PrefetchScalarGridSpec(
                num_scalar_prefetch=0,
                grid=(N, num_tiles),
                in_specs=[
                    pl.BlockSpec((Cout, CKK), lambda n, t: (0, 0)),        # resident weight
                    pl.BlockSpec((1, CKK, tile_hw), lambda n, t: (n, 0, t)),
                ],
                out_specs=[
                    pl.BlockSpec((1, Cout, tile_hw), lambda n, t: (n, 0, t)),
                    pl.BlockSpec((1, Cout, 1), lambda n, t: (n, 0, 0)),    # accumulator
                    pl.BlockSpec((1, Cout, 1), lambda n, t: (n, 0, 0)),    # accumulator
                ],
            ),
            compiler_params=pltpu.CompilerParams(
                dimension_semantics=("parallel", "arbitrary"),
                vmem_limit_bytes=_VMEM_LIMIT_BYTES),
        )(w_mat, patches)

        # Tiny per-(sample, channel) stat math in plain JAX (f32).
        mean = s1 / HW
        var = jnp.maximum(s2 / HW - mean * mean, 0.0)
        inv = lax.rsqrt(var + EPS)
        scale = inv                       # (N, Cout, 1)
        shift = -mean * inv               # (N, Cout, 1)

        out = pl.pallas_call(
            _norm_relu_kernel,
            out_shape=jax.ShapeDtypeStruct((N, Cout, HW), jnp.float32),
            grid_spec=pltpu.PrefetchScalarGridSpec(
                num_scalar_prefetch=0,
                grid=(N, num_tiles),
                in_specs=[
                    pl.BlockSpec((1, Cout, tile_hw), lambda n, t: (n, 0, t)),
                    pl.BlockSpec((1, Cout, 1), lambda n, t: (n, 0, 0)),
                    pl.BlockSpec((1, Cout, 1), lambda n, t: (n, 0, 0)),
                ],
                out_specs=pl.BlockSpec((1, Cout, tile_hw), lambda n, t: (n, 0, t)),
            ),
            compiler_params=pltpu.CompilerParams(
                dimension_semantics=("parallel", "parallel"),   # both axes megacore-shardable
                vmem_limit_bytes=_VMEM_LIMIT_BYTES),
        )(y, scale, shift)

    # (N, Cout, HW) -> NCHW is a free reshape (no transpose needed).
    return out.reshape(N, Cout, Hout, Wout)


# ----------------------------------------------------------------------------
# Pure-JAX reference (conv + instance norm + relu)
# ----------------------------------------------------------------------------
def reference_forward(x_nchw, weight, bias, *, stride=1, dilation=1, padding=0,
                      compute_dtype=jnp.float32):
    y = lax.conv_general_dilated(
        x_nchw.astype(compute_dtype), weight.astype(compute_dtype),
        window_strides=(stride, stride),
        padding=[(padding, padding), (padding, padding)],
        rhs_dilation=(dilation, dilation),
        dimension_numbers=("NCHW", "OIHW", "NCHW"),
        preferred_element_type=jnp.float32)
    y = y + bias.reshape(1, -1, 1, 1).astype(jnp.float32)
    mean = jnp.mean(y, axis=(2, 3), keepdims=True)
    var = jnp.mean((y - mean) ** 2, axis=(2, 3), keepdims=True)
    y = (y - mean) * lax.rsqrt(var + EPS)
    return jnp.maximum(y, 0.0)


if __name__ == "__main__":
    # Small shapes consistent with conv_block(in=4, out=8, k=3, padding=1).
    N, Cin, H, W = 2, 4, 16, 16
    Cout, K = 8, 3
    padding = 1

    key = jax.random.PRNGKey(0)
    kx, kw, kb = jax.random.split(key, 3)
    x = jax.random.normal(kx, (N, Cin, H, W), dtype=jnp.float32)
    fan_in = Cin * K * K
    bound = 1.0 / (fan_in ** 0.5)
    weight = jax.random.uniform(kw, (Cout, Cin, K, K), jnp.float32, -bound, bound)
    bias = jax.random.uniform(kb, (Cout,), jnp.float32, -bound, bound)

    # References: matched-precision (bf16 operands, f32 accum) and full f32.
    ref_bf16 = reference_forward(x, weight, bias, stride=1, dilation=1,
                                 padding=padding, compute_dtype=jnp.bfloat16)
    ref_f32 = reference_forward(x, weight, bias, stride=1, dilation=1,
                                padding=padding, compute_dtype=jnp.float32)

    # Path 1: fused whole-sample kernel (HW = 256 fits one lane-dense block).
    out_fused = conv_block_forward(x, weight, bias, stride=1, dilation=1,
                                   padding=padding)
    out_fused = jax.block_until_ready(out_fused)
    assert out_fused.shape == (N, Cout, H, W)
    assert jnp.allclose(out_fused, ref_bf16, atol=3e-3, rtol=3e-3), "fused mismatch vs bf16 ref"
    assert jnp.allclose(out_fused, ref_f32, atol=5e-2, rtol=5e-2), "fused mismatch vs f32 ref"

    # Path 2: force HW tiling (tile_hw=128 -> 2 tiles) to exercise the
    # two-pass (conv+stats, normalize+ReLU) pipeline used at large image sizes.
    out_tiled = conv_block_forward(x, weight, bias, stride=1, dilation=1,
                                   padding=padding, max_tile_hw=128)
    out_tiled = jax.block_until_ready(out_tiled)
    assert jnp.allclose(out_tiled, ref_bf16, atol=3e-3, rtol=3e-3), "tiled mismatch vs bf16 ref"
    assert jnp.allclose(out_tiled, out_fused, atol=1e-4, rtol=1e-4), "tiled/fused disagree"

    print("KERNEL_OK")
</pallas_src>

<mosaic_0001>
module attributes {stable_mosaic.version = 11 : i64} {
  func.func @_fused_conv_in_relu_kernel(%arg0: i32, %arg1: memref<8x36xbf16, #tpu.memory_space<vmem>>, %arg2: memref<1x36x256xbf16, #tpu.memory_space<vmem>>, %arg3: memref<1x8x256xf32, #tpu.memory_space<vmem>>) attributes {dimension_semantics = [#tpu.dimension_semantics<parallel>], iteration_bounds = array<i64: 2>, scalar_prefetch = 0 : i64, scratch_operands = 0 : i64, tpu.core_type = #tpu.core_type<tc>, window_params = [{pipeline_mode = #tpu.pipeline_mode<synchronous>, transform_indices = @transform_0, window_bounds = array<i64: 8, 36>}, {transform_indices = @transform_1, window_bounds = array<i64: 1, 36, 256>}, {transform_indices = @transform_2, window_bounds = array<i64: 1, 8, 256>}]} {
    %c0 = arith.constant 0 : index
    %c0_0 = arith.constant 0 : index
    %0 = vector.load %arg1[%c0, %c0_0] : memref<8x36xbf16, #tpu.memory_space<vmem>>, vector<8x36xbf16>
    %c0_1 = arith.constant 0 : index
    %c0_2 = arith.constant 0 : index
    %c0_3 = arith.constant 0 : index
    %1 = vector.load %arg2[%c0_1, %c0_2, %c0_3] : memref<1x36x256xbf16, #tpu.memory_space<vmem>>, vector<1x36x256xbf16>
    %2 = vector.shape_cast %1 : vector<1x36x256xbf16> to vector<36x256xbf16>
    %cst = arith.constant dense<0.000000e+00> : vector<8x256xf32>
    %3 = tpu.matmul %0, %2, %cst {dimension_numbers = #tpu.dot_dimension_numbers<[1], [0], [0], [1], [0, 0, 1, 1], [], []>} : vector<8x36xbf16>, vector<36x256xbf16>, vector<8x256xf32> -> vector<8x256xf32>
    %cst_4 = arith.constant dense<0.000000e+00> : vector<8xf32>
    %4 = vector.multi_reduction <add>, %3, %cst_4 [1] : vector<8x256xf32> to vector<8xf32>
    %5 = vector.shape_cast %4 : vector<8xf32> to vector<8x1xf32>
    %cst_5 = arith.constant 3.906250e-03 : f32
    %6 = vector.broadcast %cst_5 : f32 to vector<8x1xf32>
    %7 = arith.mulf %5, %6 : vector<8x1xf32>
    %8 = arith.mulf %3, %3 : vector<8x256xf32>
    %cst_6 = arith.constant dense<0.000000e+00> : vector<8xf32>
    %9 = vector.multi_reduction <add>, %8, %cst_6 [1] : vector<8x256xf32> to vector<8xf32>
    %10 = vector.shape_cast %9 : vector<8xf32> to vector<8x1xf32>
    %cst_7 = arith.constant 3.906250e-03 : f32
    %11 = vector.broadcast %cst_7 : f32 to vector<8x1xf32>
    %12 = arith.mulf %10, %11 : vector<8x1xf32>
    %13 = arith.mulf %7, %7 : vector<8x1xf32>
    %14 = arith.subf %12, %13 : vector<8x1xf32>
    %cst_8 = arith.constant 0.000000e+00 : f32
    %15 = vector.broadcast %cst_8 : f32 to vector<8x1xf32>
    %16 = arith.maximumf %14, %15 : vector<8x1xf32>
    %cst_9 = arith.constant 9.99999974E-6 : f32
    %17 = vector.broadcast %cst_9 : f32 to vector<8x1xf32>
    %18 = arith.addf %16, %17 : vector<8x1xf32>
    %19 = math.rsqrt %18 : vector<8x1xf32>
    %20 = vector.broadcast %7 : vector<8x1xf32> to vector<8x256xf32>
    %21 = arith.subf %3, %20 : vector<8x256xf32>
    %22 = vector.broadcast %19 : vector<8x1xf32> to vector<8x256xf32>
    %23 = arith.mulf %21, %22 : vector<8x256xf32>
    %cst_10 = arith.constant 0.000000e+00 : f32
    %24 = vector.broadcast %cst_10 : f32 to vector<8x256xf32>
    %25 = arith.maximumf %23, %24 : vector<8x256xf32>
    %c0_11 = arith.constant 0 : index
    %c0_12 = arith.constant 0 : index
    %c0_13 = arith.constant 0 : index
    %26 = vector.load %arg3[%c0_11, %c0_12, %c0_13] : memref<1x8x256xf32, #tpu.memory_space<vmem>>, vector<1x8x256xf32>
    %27 = vector.shape_cast %26 : vector<1x8x256xf32> to vector<8x256xf32>
    %28 = vector.shape_cast %25 : vector<8x256xf32> to vector<1x8x256xf32>
    tpu.vector_store %arg3[%c0_11, %c0_12, %c0_13], %28 {strides = array<i32>} : memref<1x8x256xf32, #tpu.memory_space<vmem>>, vector<1x8x256xf32>,
    return
  }
  func.func @transform_0(%arg0: i32) -> (i32, i32) {
    %c0_i32 = arith.constant 0 : i32
    %c0_i32_0 = arith.constant 0 : i32
    %c0_i32_1 = arith.constant 0 : i32
    return %c0_i32, %c0_i32_0 : i32, i32
  }
  func.func @transform_1(%arg0: i32) -> (i32, i32, i32) {
    %c0_i32 = arith.constant 0 : i32
    %c0_i32_0 = arith.constant 0 : i32
    %c0_i32_1 = arith.constant 0 : i32
    return %arg0, %c0_i32, %c0_i32_0 : i32, i32, i32
  }
  func.func @transform_2(%arg0: i32) -> (i32, i32, i32) {
    %c0_i32 = arith.constant 0 : i32
    %c0_i32_0 = arith.constant 0 : i32
    %c0_i32_1 = arith.constant 0 : i32
    return %arg0, %c0_i32, %c0_i32_0 : i32, i32, i32
  }
}

</mosaic_0001>

<llo_original>
// kernel: tpu_custom_call.1
$region0: #{tpu_custom_call.1}
  #allocation0 [shape = 'u32[]', space=smem, size = 0x4, offset = 0x4, fixed_abs, tag = 'smem constant byte address 0x4 - core index']
  #allocation1 [shape = 'u32[72,128]{1,0:T(1,128)}', space=vmem, size = 0x9000, scoped, tag = 'internal scratch']
  %s0 = inlined_call_operand.vmem [shape: bf16[8,36], index: 0, kind: input, shape index: {}]
  %s1 = inlined_call_operand.vmem [shape: bf16[2,36,256], index: 1, kind: input, shape index: {}]
  %s2 = inlined_call_operand.hbm [shape: f32[2,8,256], index: 2, kind: output, shape index: {}]
  %s3 = sld [smem:[#allocation0]]
  $region41: #{tpu_custom_call.1} parent=0
    _
  %s5 = ssub.s32 1, %s3
  %s6 = scalar_select 0, %s5, %s3
  $region1: #{tpu_custom_call.1} parent=0
    #allocation2 [shape = 'u8[16384]{0}', space=vmem, size = 0x4000, scoped, tag = 'output window, operand 0']
    #allocation3 [shape = 's32[2]{0}', space=sflag, size = 0x8, scoped, tag = 'scoped memory for tpu_custom_call.1']
    %7 = vsyncpa [#allocation3], 0
    %s8 = scalar_lea.sflag [#allocation3], 1
    %9 = vsyncpa %s8, 0
    loop: start=0, step=1, limit=4
    $region2: #{tpu_custom_call.1} parent=1 // loop_pre_header
      _
    $region3: #{tpu_custom_call.1} parent=1 // loop_header
      %s11 = sphi 0, %s15
      %p12 = scmp.ge.s32.totalorder %s11, 4
      %s19 = sphi 0, %s19
      %s21 = sphi 0, %s19
      %s22 = sphi 0, %s21
      %s36 = sphi 0, %s22
      %s42 = sphi 0, %s44
      %s45 = sphi 0, %s42
      %s46 = sphi 0, %s45
      %s62 = sphi 0, %s46
      %s68 = sphi 0, %s70
      %s71 = sphi 0, %s68
      %s72 = sphi 0, %s71
      %s88 = sphi 0, %s72
    $region4: #{tpu_custom_call.1} parent=1 // loop_header_branch
      %14 = sbr.rel (%p12) target = $region8
    $region5: #{tpu_custom_call.1} parent=1 // loop_body
      %s16 = ssub.s32 %s11, 1
      %s17 = ssub.s32 %s11, 2
      %s18 = sadd.s32 %s11, 1
      %s20 = sadd.s32 %s19, 1
      %p23 = scmp.eq.s32.totalorder %s11, 1
      %p24 = scmp.ne.s32.totalorder %s19, %s21
      %p25 = scmp.eq.s32.totalorder %s11, 0
      %p26 = por %p24, %p25
      %p27 = scmp.ne.s32.totalorder %s19, %s21
      %p28 = scmp.eq.s32.totalorder %s16, 1
      %p29 = por %p27, %p28
      %p30 = scmp.ne.s32.totalorder %s21, %s22
      %p31 = scmp.eq.s32.totalorder %s16, 0
      %p32 = por %p30, %p31
      %p33 = scmp.ne.s32.totalorder %s21, %s22
      %p34 = scmp.eq.s32.totalorder %s17, 1
      %p35 = por %p33, %p34
      %p37 = scmp.ne.s32.totalorder %s22, %s36
      %p38 = scmp.eq.s32.totalorder %s17, 0
      %p39 = por %p37, %p38
      %s40 = ssub.s32 %s11, %s18
      %p41 = scmp.eq.s32.totalorder %s40, 0
      %s43 = sadd.s32 %s42, 1
      %s44 = scalar_select %p41, %s42, %s43
      %p47 = pneg %p41
      %p48 = scmp.eq.s32.totalorder %s11, 1
      %p49 = por %p47, %p48
      %p50 = scmp.ne.s32.totalorder %s42, %s45
      %p51 = scmp.eq.s32.totalorder %s11, 0
      %p52 = por %p50, %p51
      %p53 = scmp.ne.s32.totalorder %s42, %s45
      %p54 = scmp.eq.s32.totalorder %s16, 1
      %p55 = por %p53, %p54
      %p56 = scmp.ne.s32.totalorder %s45, %s46
      %p57 = scmp.eq.s32.totalorder %s16, 0
      %p58 = por %p56, %p57
      %p59 = scmp.ne.s32.totalorder %s45, %s46
      %p60 = scmp.eq.s32.totalorder %s17, 1
      %p61 = por %p59, %p60
      %p63 = scmp.ne.s32.totalorder %s46, %s62
      %p64 = scmp.eq.s32.totalorder %s17, 0
      %p65 = por %p63, %p64
      %s66 = ssub.s32 %s11, %s18
      %p67 = scmp.eq.s32.totalorder %s66, 0
      %s69 = sadd.s32 %s68, 1
      %s70 = scalar_select %p67, %s68, %s69
      %p73 = pneg %p67
      %p74 = scmp.eq.s32.totalorder %s11, 1
      %p75 = por %p73, %p74
      %p76 = scmp.ne.s32.totalorder %s68, %s71
      %p77 = scmp.eq.s32.totalorder %s11, 0
      %p78 = por %p76, %p77
      %p79 = scmp.ne.s32.totalorder %s68, %s71
      %p80 = scmp.eq.s32.totalorder %s16, 1
      %p81 = por %p79, %p80
      %p82 = scmp.ne.s32.totalorder %s71, %s72
      %p83 = scmp.eq.s32.totalorder %s16, 0
      %p84 = por %p82, %p83
      %p85 = scmp.ne.s32.totalorder %s71, %s72
      %p86 = scmp.eq.s32.totalorder %s17, 1
      %p87 = por %p85, %p86
      %p89 = scmp.ne.s32.totalorder %s72, %s88
      %p90 = scmp.eq.s32.totalorder %s17, 0
      %p91 = por %p89, %p90
      %p92 = scmp.le.s32.totalorder 1, %s11
      %p93 = scmp.lt.s32.totalorder %s11, 3
      %p94 = pnand %p92, %p93
      %p95 = pneg %p94
      // Predicated region
      $region9: #{tpu_custom_call.1} parent=5 // pred_check
        _
      $region10: #{tpu_custom_call.1} parent=5 // pred_check_branch
        %97 = sbr.rel (%p94) target = $region12
      $region11: #{tpu_custom_call.1} parent=5 // pred_region
        %s98 = ssub.s32 %s11, 1
        // Predicated region
        $region13: #{tpu_custom_call.1} parent=11 // pred_check
          %p99 = pneg %p32
        $region14: #{tpu_custom_call.1} parent=11 // pred_check_branch
          %101 = sbr.rel (%p99) target = $region16
        $region15: #{tpu_custom_call.1} parent=11 // pred_region
          _
        $region16: #{tpu_custom_call.1} parent=11 // pred_fallthru
          _
      $region12: #{tpu_custom_call.1} parent=5 // pred_fallthru
        _
      %p102 = scmp.lt.s32.totalorder %s11, 2
      // Predicated region
      $region17: #{tpu_custom_call.1} parent=5 // pred_check
        %p103 = pneg %p102
      $region18: #{tpu_custom_call.1} parent=5 // pred_check_branch
        %105 = sbr.rel (%p103) target = $region20
      $region19: #{tpu_custom_call.1} parent=5 // pred_region
        // Predicated region
        $region21: #{tpu_custom_call.1} parent=19 // pred_check
          %p106 = pneg %p52
        $region22: #{tpu_custom_call.1} parent=19 // pred_check_branch
          %108 = sbr.rel (%p106) target = $region24
        $region23: #{tpu_custom_call.1} parent=19 // pred_region
          %p109 = scmp.lt.s32.totalorder %s11, 1
          %s110 = scalar_select %p109, %s11, 1
          %s111 = smul.addr %s110, 10
          %s112 = smul.addr %s111, 4
          %s113 = scalar_lea.vmem %s1, %s112
        $region24: #{tpu_custom_call.1} parent=19 // pred_fallthru
          _
      $region20: #{tpu_custom_call.1} parent=5 // pred_fallthru
        _
      %p114 = scmp.le.s32.totalorder 1, %s11
      %p115 = scmp.lt.s32.totalorder %s11, 3
      %p116 = pnand %p114, %p115
      %p117 = pneg %p116
      // Predicated region
      $region25: #{tpu_custom_call.1} parent=5 // pred_check
        _
      $region26: #{tpu_custom_call.1} parent=5 // pred_check_branch
        %119 = sbr.rel (%p116) target = $region28
      $region27: #{tpu_custom_call.1} parent=5 // pred_region
        %s120 = ssub.s32 %s11, 1
        %p121 = pneg %p32
        %p122 = pneg %p29
        %p123 = scmp.lt.s32.totalorder %s16, 1
        %s124 = scalar_select %p123, %s16, 1
        %s125 = smul.addr %s124, 10
        %s126 = smul.addr %s125, 4
        %s127 = scalar_lea.vmem %s1, %s126
        %p128 = pneg %p58
        %p129 = pneg %p55
        %p130 = pneg %p84
        %p131 = pneg %p81
        %s132 = sand.u32 %s71, 1
        %s133 = scalar_lea.sflag [#allocation3], %s132
        %s134 = sand.u32 %s71, 1
        %s135 = smul.addr %s134, 16
        %s136 = scalar_lea.vmem [#allocation2], %s135
        %p137 = scmp.lt.s32.totalorder %s16, 1
        %s138 = scalar_select %p137, %s16, 1
        %s139 = smul.addr %s138, 10
        %s140 = smul.addr %s139, 4
        %s141 = scalar_lea.vmem %s1, %s140
        %v143 = vld [vmem:[%s0] sm:$0xf]
        %v144 = vld [vmem:[%s141] sm:$0xff]
        %v145 = vld [vmem:[%s141 + $0x8] sm:$0xff]
        %v146 = vld [vmem:[%s141 + $0x10] sm:$0xff]
        %v147 = vld [vmem:[%s141 + $0x18] sm:$0xff]
        %v148 = vld [vmem:[%s141 + $0x20] sm:$0x33]
        %v154 = vunpack.c.l.b16 %v144
        %v155 = vunpack.c.h.b16 %v144
        %v156 = vunpack.c.l.b16 %v145
        %v157 = vunpack.c.h.b16 %v145
        %v158 = vunpack.c.l.b16 %v146
        %v159 = vunpack.c.h.b16 %v146
        %v160 = vunpack.c.l.b16 %v147
        %v161 = vunpack.c.h.b16 %v147
        %v162 = vunpack.c.l.b16 %v148
        %v163 = vunpack.c.h.b16 %v148
        %v164 = vpack.c.b16 %v156, %v154
        %v165 = vpack.c.b16 %v157, %v155
        %v166 = vpack.c.b16 %v160, %v158
        %v167 = vpack.c.b16 %v161, %v159
        %v168 = vpack.c.b16 %v162, %v162
        %v169 = vpack.c.b16 %v163, %v163
        %vm174 = vcmask 293888
        %v176 = vsel %vm174, %v143, 0
        %vm178 = vcmask 1041408
        %v180 = vsel %vm178, %v168, 0
        %v183 = vsel %vm178, %v169, 0
        %185 = vmatpush.bf16.msra.mxu0 0
        %186 = vmatpush.bf16.msra.mxu0 0
        %187 = vmatpush.bf16.msra.mxu0 0
        %188 = vmatpush.bf16.msra.mxu0 0
        %189 = vmatpush.bf16.msra.mxu0 0
        %190 = vmatpush.bf16.msra.mxu0 %v180
        %191 = vmatpush.bf16.msra.mxu0 %v166
        %192 = vmatpush.bf16.msra.mxu0 %v164
        %193 = vmatmul.bf16.gmra.mxu0 %v176
        %v194 = vpop.f32.mrf.mxu0
        %v195 = vadd.f32 0.0, %v194
        %v196 = vpop.f32.mrf.mxu0
        %197 = vdwg.mxu0
        %198 = vmatpush.bf16.msra.mxu0 0
        %199 = vmatpush.bf16.msra.mxu0 0
        %200 = vmatpush.bf16.msra.mxu0 0
        %201 = vmatpush.bf16.msra.mxu0 0
        %202 = vmatpush.bf16.msra.mxu0 0
        %203 = vmatpush.bf16.msra.mxu0 %v183
        %204 = vmatpush.bf16.msra.mxu0 %v167
        %205 = vmatpush.bf16.msra.mxu0 %v165
        %206 = vmatmul.bf16.gmra.mxu0 %v176
        %v207 = vpop.f32.mrf.mxu0
        %v208 = vadd.f32 0.0, %v207
        %v209 = vpop.f32.mrf.mxu0
        %210 = vdwg.mxu0
        %v211 = vadd.f32 %v195, %v208
        %212 = vadd.xlane.f32.xlu0 %v211
        %v213 = vpop.xlane.xlu0 %212
        %v214 = vmul.f32 %v213, 0.00390625
        %v215 = vmul.f32 %v195, %v195
        %v216 = vmul.f32 %v208, %v208
        %v217 = vadd.f32 %v215, %v216
        %218 = vadd.xlane.f32.xlu0 %v217
        %v219 = vpop.xlane.xlu0 %218
        %v220 = vmul.f32 %v219, 0.00390625
        %v221 = vmul.f32 %v214, %v214
        %v222 = vsub.f32 %v220, %v221
        %v223 = vmax.f32 %v222, 0.0
        %v224 = vadd.f32 %v223, 1e-05
        %v225 = vrsqrt.pop %v224
        %v226 = vmul.f32 %v225, %v224
        %v227 = vmul.f32 %v226, %v225
        %v228 = vmul.f32 0.5, %v227
        %v229 = vsub.f32 1.5, %v228
        %v230 = vmul.f32 %v225, %v229
        %vm231 = vweird.f32 %v224
        %vm232 = vweird.f32 %v225
        %vm233 = vmor %vm231, %vm232
        %v234 = vsel %vm233, %v225, %v230
        %v235 = vsub.f32 %v195, %v214
        %v236 = vsub.f32 %v208, %v214
        %v237 = vmul.f32 %v235, %v234
        %v238 = vmul.f32 %v236, %v234
        %v239 = vmax.f32 %v237, 0.0
        %v240 = vmax.f32 %v238, 0.0
        %241 = vst [vmem:[%s136] sm:$0xff] %v239
        %242 = vst [vmem:[%s136 + $0x8] sm:$0xff] %v240
        %s243 = sand.u32 %s71, 1
        %s244 = scalar_lea.sflag [#allocation3], %s243
        %s245 = sand.u32 %s71, 1
        %s246 = smul.addr %s245, 16
        %s247 = scalar_lea.vmem [#allocation2], %s246
        // Predicated region
        $region29: #{tpu_custom_call.1} parent=27 // pred_check
          %p248 = pneg %p81
        $region30: #{tpu_custom_call.1} parent=27 // pred_check_branch
          %250 = sbr.rel (%p248) target = $region32
        $region31: #{tpu_custom_call.1} parent=27 // pred_region
          %252 = vsyncadd %s244, 0
          %s253 = smul.addr %s16, 2
          %s254 = smul.addr %s253, 8
          %s255 = scalar_lea.hbm %s2, %s254
          %s257 = sshll.u32 %s247, 4
          %s258 = int_to_ptr.vmem [resolvable:$true] %s257
          %s259 = sshll.u32 %s255, 4
          %s260 = int_to_ptr.hbm [resolvable:$true] %s259
          %262 = dma.vmem_to_hbm [thread:$0]  %s258, 256, %s260, %s244
        $region32: #{tpu_custom_call.1} parent=27 // pred_fallthru
          _
      $region28: #{tpu_custom_call.1} parent=5 // pred_fallthru
        _
      %p263 = scmp.le.s32.totalorder 2, %s11
      // Predicated region
      $region33: #{tpu_custom_call.1} parent=5 // pred_check
        %p264 = pneg %p263
      $region34: #{tpu_custom_call.1} parent=5 // pred_check_branch
        %266 = sbr.rel (%p264) target = $region36
      $region35: #{tpu_custom_call.1} parent=5 // pred_region
        %s267 = ssub.s32 %s11, 2
        // Predicated region
        $region37: #{tpu_custom_call.1} parent=35 // pred_check
          %p268 = pneg %p87
        $region38: #{tpu_custom_call.1} parent=35 // pred_check_branch
          %270 = sbr.rel (%p268) target = $region40
        $region39: #{tpu_custom_call.1} parent=35 // pred_region
          %s271 = sand.u32 %s72, 1
          %s272 = scalar_lea.sflag [#allocation3], %s271
          %s273 = sand.u32 %s72, 1
          %s274 = smul.addr %s273, 16
          %s275 = scalar_lea.vmem [#allocation2], %s274
          %277 = dma.done %s272, 256
        $region40: #{tpu_custom_call.1} parent=35 // pred_fallthru
          _
      $region36: #{tpu_custom_call.1} parent=5 // pred_fallthru
        _
    $region6: #{tpu_custom_call.1} parent=1 // loop_footer
      %s15 = sadd.s32 1, %s11
    $region7: #{tpu_custom_call.1} parent=1 // loop_footer_branch
      %10 = sbr.rel target = $region3
    $region8: #{tpu_custom_call.1} parent=1 // loop_exit
      _
    %278 = vsyncpa [#allocation3], 1
    %s279 = scalar_lea.sflag [#allocation3], 1
    %280 = vsyncpa %s279, 1

</llo_original>
